<compile_context>
chip_gen: v6e
topology: v6e:2x2x1
jax: 0.10.0
libtpu: 0.0.40
codegen_flags: <defaults>
</compile_context>

<pallas_src>
import numpy as np

import jax
import jax.numpy as jnp
from jax.experimental import pallas as pl
from jax.experimental.pallas import tpu as pltpu


# ---------------------------------------------------------------------------
# Host-side operator construction (tiny, shape-static matrices)
# ---------------------------------------------------------------------------
def _row_operator_conv(H, ph):
    """(3*OH, H): for row-tap ky and output row y, a 0/1 selector of the input
    row that the (padded) nearest-upsampled image holds at row y + ky - 1."""
    OH = 2 * H + ph
    y = np.arange(OH)
    blocks = []
    for ky in range(3):
        r = y + ky - 1                                 # row in padded upsample
        valid = (r >= ph) & (r < ph + 2 * H)
        h_src = np.clip((r - ph) // 2, 0, H - 1)
        a = np.zeros((OH, H), np.float32)
        a[y[valid], h_src[valid]] = 1.0
        blocks.append(a)
    return jnp.asarray(np.concatenate(blocks, axis=0))


def _col_weight_operator_conv(W, pw, conv_w):
    """(3, W*Cin, OW*Cout): per row-tap ky, combines the column-direction
    upsample/pad/conv-tap selection with the Cin -> Cout channel mixing."""
    cout, cin = conv_w.shape[0], conv_w.shape[1]
    OW = 2 * W + pw
    x = np.arange(OW)
    blocks = []
    for ky in range(3):
        c = jnp.zeros((W * cin, OW * cout), jnp.float32)
        for kx in range(3):
            s = x + kx - 1
            valid = (s >= pw) & (s < pw + 2 * W)
            w_src = np.clip((s - pw) // 2, 0, W - 1)
            m = np.zeros((W, OW), np.float32)
            m[w_src[valid], x[valid]] = 1.0
            c = c + jnp.kron(jnp.asarray(m),
                             conv_w[:, :, ky, kx].T.astype(jnp.float32))
        blocks.append(c)
    return jnp.stack(blocks, axis=0)


def _row_operator_up(H, ph):
    """(OH, H) 0/1 row-duplication (+ optional top pad) matrix."""
    OH = 2 * H + ph
    y = np.arange(OH)
    valid = y >= ph
    h_src = np.clip((y - ph) // 2, 0, H - 1)
    a = np.zeros((OH, H), np.float32)
    a[y[valid], h_src[valid]] = 1.0
    return jnp.asarray(a)


def _col_operator_up(W, pw, cin):
    """(W*Cin, OW*Cin) 0/1 column-duplication (+ left pad) matrix, channel-kept."""
    OW = 2 * W + pw
    x = np.arange(OW)
    valid = x >= pw
    w_src = np.clip((x - pw) // 2, 0, W - 1)
    m = np.zeros((W, OW), np.float32)
    m[w_src[valid], x[valid]] = 1.0
    return jnp.asarray(np.kron(m, np.eye(cin, dtype=np.float32)))


# ---------------------------------------------------------------------------
# Pallas kernels
# ---------------------------------------------------------------------------
def _upsample_conv_kernel(x_ref, a_ref, c_ref, b_ref, out_ref):
    # x_ref:   (1, H, W*Cin)        flattened-NHWC input image
    # a_ref:   (3*OH, H)            stacked row selectors (one per row tap ky)
    # c_ref:   (3, W*Cin, OW*Cout)  column selector x conv-weight scatter per ky
    # b_ref:   (1, OW*Cout)         bias tiled across output columns
    # out_ref: (1, OH, OW*Cout)
    oh = out_ref.shape[1]
    x2 = x_ref[0]                                               # (H, W*Cin)
    r = jnp.dot(a_ref[...], x2,
                preferred_element_type=jnp.float32)             # (3*OH, W*Cin)
    acc = jnp.dot(r[0:oh], c_ref[0], preferred_element_type=jnp.float32)
    for ky in range(1, 3):                                      # static unroll
        acc = acc + jnp.dot(r[ky * oh:(ky + 1) * oh], c_ref[ky],
                            preferred_element_type=jnp.float32)
    out_ref[0] = (acc + b_ref[...]).astype(out_ref.dtype)       # lane-dense store


def _upsample_only_kernel(x_ref, a_ref, c_ref, out_ref):
    # x_ref: (1, H, W*Cin); a_ref: (OH, H); c_ref: (W*Cin, OW*Cin)
    x2 = x_ref[0]
    up = jnp.dot(a_ref[...], x2, preferred_element_type=jnp.float32)
    out_ref[0] = jnp.dot(up, c_ref[...],
                         preferred_element_type=jnp.float32).astype(out_ref.dtype)


# ---------------------------------------------------------------------------
# Wrapper (forward pass of the PyTorch Upsample module, dims=2)
# ---------------------------------------------------------------------------
def upsample_forward(x, *, use_conv, conv_w=None, conv_b=None, dims=2):
    if dims != 2:
        # TODO(synk): dims=1 (Conv1d) and dims=3 (depth-preserving interpolate
        # + Conv3d) variants are not implemented as Pallas kernels.
        raise NotImplementedError("only dims=2 is implemented")
    N, Cin, H, W = x.shape
    # PyTorch: `if x.shape[-1] == x.shape[-2] == 3: out = F.pad(out, (1,0,1,0))`
    ph = pw = 1 if (H == 3 and W == 3) else 0
    OH, OW = 2 * H + ph, 2 * W + pw

    # NHWC with (W, C) folded into the lane axis; contiguous reshape, free.
    x2 = jnp.transpose(x, (0, 2, 3, 1)).reshape(N, H, W * Cin).astype(jnp.float32)

    if use_conv:
        assert conv_w.shape[1] == Cin and conv_w.shape[2:] == (3, 3)
        Cout = conv_w.shape[0]
        a_op = _row_operator_conv(H, ph)                     # (3*OH, H)
        c_op = _col_weight_operator_conv(W, pw, conv_w)      # (3, W*Cin, OW*Cout)
        b_row = jnp.tile(conv_b.astype(jnp.float32), (OW,)).reshape(1, OW * Cout)

        out_flat = pl.pallas_call(
            _upsample_conv_kernel,
            out_shape=jax.ShapeDtypeStruct((N, OH, OW * Cout), jnp.float32),
            grid_spec=pltpu.PrefetchScalarGridSpec(
                num_scalar_prefetch=0,
                grid=(N,),
                in_specs=[
                    pl.BlockSpec((1, H, W * Cin), lambda n: (n, 0, 0)),
                    pl.BlockSpec((3 * OH, H), lambda n: (0, 0)),
                    pl.BlockSpec((3, W * Cin, OW * Cout), lambda n: (0, 0, 0)),
                    pl.BlockSpec((1, OW * Cout), lambda n: (0, 0)),
                ],
                out_specs=pl.BlockSpec((1, OH, OW * Cout), lambda n: (n, 0, 0)),
            ),
            compiler_params=pltpu.CompilerParams(
                dimension_semantics=("parallel",)),
        )(x2, a_op, c_op, b_row)
        out = out_flat.reshape(N, OH, OW, Cout).transpose(0, 3, 1, 2)
    else:
        a_op = _row_operator_up(H, ph)                       # (OH, H)
        c_op = _col_operator_up(W, pw, Cin)                  # (W*Cin, OW*Cin)
        out_flat = pl.pallas_call(
            _upsample_only_kernel,
            out_shape=jax.ShapeDtypeStruct((N, OH, OW * Cin), jnp.float32),
            grid_spec=pltpu.PrefetchScalarGridSpec(
                num_scalar_prefetch=0,
                grid=(N,),
                in_specs=[
                    pl.BlockSpec((1, H, W * Cin), lambda n: (n, 0, 0)),
                    pl.BlockSpec((OH, H), lambda n: (0, 0)),
                    pl.BlockSpec((W * Cin, OW * Cin), lambda n: (0, 0)),
                ],
                out_specs=pl.BlockSpec((1, OH, OW * Cin), lambda n: (n, 0, 0)),
            ),
            compiler_params=pltpu.CompilerParams(
                dimension_semantics=("parallel",)),
        )(x2, a_op, c_op)
        out = out_flat.reshape(N, OH, OW, Cin).transpose(0, 3, 1, 2)
    return out


# ---------------------------------------------------------------------------
# Pure-JAX reference (for a quick correctness sanity check)
# ---------------------------------------------------------------------------
def upsample_reference(x, use_conv, conv_w=None, conv_b=None):
    N, C, H, W = x.shape
    up = jnp.repeat(jnp.repeat(x, 2, axis=2), 2, axis=3)     # nearest 2x
    if H == 3 and W == 3:
        up = jnp.pad(up, ((0, 0), (0, 0), (1, 0), (1, 0)))
    if not use_conv:
        return up
    out = jax.lax.conv_general_dilated(
        up, conv_w, window_strides=(1, 1), padding=((1, 1), (1, 1)),
        dimension_numbers=("NCHW", "OIHW", "NCHW"),
        precision=jax.lax.Precision.HIGHEST)
    return out + conv_b.reshape(1, -1, 1, 1)


# ---------------------------------------------------------------------------
if __name__ == "__main__":
    # Small shapes consistent with the module's forward: NCHW input.
    N, C, H, W = 2, 4, 16, 16

    key = jax.random.PRNGKey(0)
    k1, k2, k3 = jax.random.split(key, 3)
    x = jax.random.normal(k1, (N, C, H, W), jnp.float32)
    conv_w = 0.1 * jax.random.normal(k2, (C, C, 3, 3), jnp.float32)   # OIHW
    conv_b = 0.1 * jax.random.normal(k3, (C,), jnp.float32)

    out_conv = upsample_forward(x, use_conv=True, conv_w=conv_w, conv_b=conv_b)
    out_plain = upsample_forward(x, use_conv=False)
    jax.block_until_ready((out_conv, out_plain))

    ref_conv = upsample_reference(x, True, conv_w, conv_b)
    ref_plain = upsample_reference(x, False)

    assert out_conv.shape == ref_conv.shape == (N, C, 2 * H, 2 * W)
    assert out_plain.shape == ref_plain.shape == (N, C, 2 * H, 2 * W)
    assert jnp.allclose(out_conv, ref_conv, atol=5e-3, rtol=5e-3)
    assert jnp.allclose(out_plain, ref_plain, atol=1e-6, rtol=1e-6)

    print("KERNEL_OK")
</pallas_src>

<mosaic_0001>
module attributes {stable_mosaic.version = 11 : i64} {
  func.func @_upsample_conv_kernel(%arg0: i32, %arg1: memref<1x16x64xf32, #tpu.memory_space<vmem>>, %arg2: memref<96x16xf32, #tpu.memory_space<vmem>>, %arg3: memref<3x64x128xf32, #tpu.memory_space<vmem>>, %arg4: memref<1x128xf32, #tpu.memory_space<vmem>>, %arg5: memref<1x32x128xf32, #tpu.memory_space<vmem>>) attributes {dimension_semantics = [#tpu.dimension_semantics<parallel>], iteration_bounds = array<i64: 2>, scalar_prefetch = 0 : i64, scratch_operands = 0 : i64, tpu.core_type = #tpu.core_type<tc>, window_params = [{transform_indices = @transform_0, window_bounds = array<i64: 1, 16, 64>}, {pipeline_mode = #tpu.pipeline_mode<synchronous>, transform_indices = @transform_1, window_bounds = array<i64: 96, 16>}, {pipeline_mode = #tpu.pipeline_mode<synchronous>, transform_indices = @transform_2, window_bounds = array<i64: 3, 64, 128>}, {pipeline_mode = #tpu.pipeline_mode<synchronous>, transform_indices = @transform_3, window_bounds = array<i64: 1, 128>}, {transform_indices = @transform_4, window_bounds = array<i64: 1, 32, 128>}]} {
    %c0 = arith.constant 0 : index
    %c0_0 = arith.constant 0 : index
    %c0_1 = arith.constant 0 : index
    %0 = vector.load %arg1[%c0, %c0_0, %c0_1] : memref<1x16x64xf32, #tpu.memory_space<vmem>>, vector<1x16x64xf32>
    %1 = vector.shape_cast %0 : vector<1x16x64xf32> to vector<16x64xf32>
    %c0_2 = arith.constant 0 : index
    %c0_3 = arith.constant 0 : index
    %2 = vector.load %arg2[%c0_2, %c0_3] : memref<96x16xf32, #tpu.memory_space<vmem>>, vector<96x16xf32>
    %cst = arith.constant dense<0.000000e+00> : vector<96x64xf32>
    %3 = tpu.matmul %2, %1, %cst {dimension_numbers = #tpu.dot_dimension_numbers<[1], [0], [0], [1], [0, 0, 1, 1], [], []>} : vector<96x16xf32>, vector<16x64xf32>, vector<96x64xf32> -> vector<96x64xf32>
    %4 = vector.extract_strided_slice %3 {offsets = [0, 0], sizes = [32, 64], strides = [1, 1]} : vector<96x64xf32> to vector<32x64xf32>
    %c0_4 = arith.constant 0 : index
    %c0_5 = arith.constant 0 : index
    %c0_6 = arith.constant 0 : index
    %5 = vector.load %arg3[%c0_4, %c0_5, %c0_6] : memref<3x64x128xf32, #tpu.memory_space<vmem>>, vector<1x64x128xf32>
    %6 = vector.shape_cast %5 : vector<1x64x128xf32> to vector<64x128xf32>
    %cst_7 = arith.constant dense<0.000000e+00> : vector<32x128xf32>
    %7 = tpu.matmul %4, %6, %cst_7 {dimension_numbers = #tpu.dot_dimension_numbers<[1], [0], [0], [1], [0, 0, 1, 1], [], []>} : vector<32x64xf32>, vector<64x128xf32>, vector<32x128xf32> -> vector<32x128xf32>
    %8 = vector.extract_strided_slice %3 {offsets = [32, 0], sizes = [32, 64], strides = [1, 1]} : vector<96x64xf32> to vector<32x64xf32>
    %c1 = arith.constant 1 : index
    %c0_8 = arith.constant 0 : index
    %c0_9 = arith.constant 0 : index
    %9 = vector.load %arg3[%c1, %c0_8, %c0_9] : memref<3x64x128xf32, #tpu.memory_space<vmem>>, vector<1x64x128xf32>
    %10 = vector.shape_cast %9 : vector<1x64x128xf32> to vector<64x128xf32>
    %cst_10 = arith.constant dense<0.000000e+00> : vector<32x128xf32>
    %11 = tpu.matmul %8, %10, %cst_10 {dimension_numbers = #tpu.dot_dimension_numbers<[1], [0], [0], [1], [0, 0, 1, 1], [], []>} : vector<32x64xf32>, vector<64x128xf32>, vector<32x128xf32> -> vector<32x128xf32>
    %12 = arith.addf %7, %11 : vector<32x128xf32>
    %13 = vector.extract_strided_slice %3 {offsets = [64, 0], sizes = [32, 64], strides = [1, 1]} : vector<96x64xf32> to vector<32x64xf32>
    %c2 = arith.constant 2 : index
    %c0_11 = arith.constant 0 : index
    %c0_12 = arith.constant 0 : index
    %14 = vector.load %arg3[%c2, %c0_11, %c0_12] : memref<3x64x128xf32, #tpu.memory_space<vmem>>, vector<1x64x128xf32>
    %15 = vector.shape_cast %14 : vector<1x64x128xf32> to vector<64x128xf32>
    %cst_13 = arith.constant dense<0.000000e+00> : vector<32x128xf32>
    %16 = tpu.matmul %13, %15, %cst_13 {dimension_numbers = #tpu.dot_dimension_numbers<[1], [0], [0], [1], [0, 0, 1, 1], [], []>} : vector<32x64xf32>, vector<64x128xf32>, vector<32x128xf32> -> vector<32x128xf32>
    %17 = arith.addf %12, %16 : vector<32x128xf32>
    %c0_14 = arith.constant 0 : index
    %c0_15 = arith.constant 0 : index
    %18 = vector.load %arg4[%c0_14, %c0_15] : memref<1x128xf32, #tpu.memory_space<vmem>>, vector<1x128xf32>
    %19 = vector.broadcast %18 : vector<1x128xf32> to vector<32x128xf32>
    %20 = arith.addf %17, %19 : vector<32x128xf32>
    %c0_16 = arith.constant 0 : index
    %c0_17 = arith.constant 0 : index
    %c0_18 = arith.constant 0 : index
    %21 = vector.load %arg5[%c0_16, %c0_17, %c0_18] : memref<1x32x128xf32, #tpu.memory_space<vmem>>, vector<1x32x128xf32>
    %22 = vector.shape_cast %21 : vector<1x32x128xf32> to vector<32x128xf32>
    %23 = vector.shape_cast %20 : vector<32x128xf32> to vector<1x32x128xf32>
    tpu.vector_store %arg5[%c0_16, %c0_17, %c0_18], %23 {strides = array<i32>} : memref<1x32x128xf32, #tpu.memory_space<vmem>>, vector<1x32x128xf32>,
    return
  }
  func.func @transform_0(%arg0: i32) -> (i32, i32, i32) {
    %c0_i32 = arith.constant 0 : i32
    %c0_i32_0 = arith.constant 0 : i32
    %c0_i32_1 = arith.constant 0 : i32
    return %arg0, %c0_i32, %c0_i32_0 : i32, i32, i32
  }
  func.func @transform_1(%arg0: i32) -> (i32, i32) {
    %c0_i32 = arith.constant 0 : i32
    %c0_i32_0 = arith.constant 0 : i32
    %c0_i32_1 = arith.constant 0 : i32
    return %c0_i32, %c0_i32_0 : i32, i32
  }
  func.func @transform_2(%arg0: i32) -> (i32, i32, i32) {
    %c0_i32 = arith.constant 0 : i32
    %c0_i32_0 = arith.constant 0 : i32
    %c0_i32_1 = arith.constant 0 : i32
    %c0_i32_2 = arith.constant 0 : i32
    return %c0_i32, %c0_i32_0, %c0_i32_1 : i32, i32, i32
  }
  func.func @transform_3(%arg0: i32) -> (i32, i32) {
    %c0_i32 = arith.constant 0 : i32
    %c0_i32_0 = arith.constant 0 : i32
    %c0_i32_1 = arith.constant 0 : i32
    return %c0_i32, %c0_i32_0 : i32, i32
  }
  func.func @transform_4(%arg0: i32) -> (i32, i32, i32) {
    %c0_i32 = arith.constant 0 : i32
    %c0_i32_0 = arith.constant 0 : i32
    %c0_i32_1 = arith.constant 0 : i32
    return %arg0, %c0_i32, %c0_i32_0 : i32, i32, i32
  }
}

</mosaic_0001>

<llo_original>
// kernel: tpu_custom_call.1
$region0: #{tpu_custom_call.1}
  #allocation0 [shape = 'u32[]', space=smem, size = 0x4, offset = 0x4, fixed_abs, tag = 'smem constant byte address 0x4 - core index']
  #allocation1 [shape = 'u32[144,128]{1,0:T(1,128)}', space=vmem, size = 0x12000, scoped, tag = 'internal scratch']
  %s0 = inlined_call_operand.vmem [shape: f32[2,16,64], index: 0, kind: input, shape index: {}]
  %s1 = inlined_call_operand.vmem [shape: f32[96,16], index: 1, kind: input, shape index: {}]
  %s2 = inlined_call_operand.hbm [shape: f32[3,64,128], index: 2, kind: input, shape index: {}]
  %s3 = inlined_call_operand.vmem [shape: f32[1,128], index: 3, kind: input, shape index: {}]
  %s4 = inlined_call_operand.hbm [shape: f32[2,32,128], index: 4, kind: output, shape index: {}]
  %s5 = sld [smem:[#allocation0]]
  $region53: #{tpu_custom_call.1} parent=0
    _
  %s7 = ssub.s32 1, %s5
  %s8 = scalar_select 0, %s7, %s5
  $region1: #{tpu_custom_call.1} parent=0
    #allocation2 [shape = 'u8[98304]{0}', space=vmem, size = 0x18000, scoped, tag = 'input window, operand 2, single buffered']
    #allocation3 [shape = 's32[2]{0}', space=sflag, size = 0x8, scoped, tag = 'scoped memory for tpu_custom_call.1']
    #allocation4 [shape = 's32[2]{0}', space=sflag, size = 0x8, scoped, tag = 'scoped memory for tpu_custom_call.1']
    #allocation5 [shape = 'u8[32768]{0}', space=vmem, size = 0x8000, scoped, tag = 'output window, operand 0']
    %9 = vsyncpa [#allocation3], 0
    %10 = vsyncpa [#allocation4], 0
    %s11 = scalar_lea.sflag [#allocation4], 1
    %12 = vsyncpa %s11, 0
    loop: start=0, step=1, limit=4
    $region2: #{tpu_custom_call.1} parent=1 // loop_pre_header
      _
    $region3: #{tpu_custom_call.1} parent=1 // loop_header
      %s14 = sphi 0, %s18
      %p15 = scmp.ge.s32.totalorder %s14, 4
      %s24 = sphi 0, %s26
      %s27 = sphi 0, %s24
      %s28 = sphi 0, %s27
      %s44 = sphi 0, %s28
      %s48 = sphi 0, %s48
      %s50 = sphi 0, %s48
      %s51 = sphi 0, %s50
      %s65 = sphi 0, %s51
      %s69 = sphi 0, %s69
      %s71 = sphi 0, %s69
      %s72 = sphi 0, %s71
      %s86 = sphi 0, %s72
      %s90 = sphi 0, %s90
      %s92 = sphi 0, %s90
      %s93 = sphi 0, %s92
      %s107 = sphi 0, %s93
      %s113 = sphi 0, %s115
      %s116 = sphi 0, %s113
      %s117 = sphi 0, %s116
      %s133 = sphi 0, %s117
    $region4: #{tpu_custom_call.1} parent=1 // loop_header_branch
      %17 = sbr.rel (%p15) target = $region8
    $region5: #{tpu_custom_call.1} parent=1 // loop_body
      %s19 = ssub.s32 %s14, 1
      %s20 = ssub.s32 %s14, 2
      %s21 = sadd.s32 %s14, 1
      %s22 = ssub.s32 %s14, %s21
      %p23 = scmp.eq.s32.totalorder %s22, 0
      %s25 = sadd.s32 %s24, 1
      %s26 = scalar_select %p23, %s24, %s25
      %p29 = pneg %p23
      %p30 = scmp.eq.s32.totalorder %s14, 1
      %p31 = por %p29, %p30
      %p32 = scmp.ne.s32.totalorder %s24, %s27
      %p33 = scmp.eq.s32.totalorder %s14, 0
      %p34 = por %p32, %p33
      %p35 = scmp.ne.s32.totalorder %s24, %s27
      %p36 = scmp.eq.s32.totalorder %s19, 1
      %p37 = por %p35, %p36
      %p38 = scmp.ne.s32.totalorder %s27, %s28
      %p39 = scmp.eq.s32.totalorder %s19, 0
      %p40 = por %p38, %p39
      %p41 = scmp.ne.s32.totalorder %s27, %s28
      %p42 = scmp.eq.s32.totalorder %s20, 1
      %p43 = por %p41, %p42
      %p45 = scmp.ne.s32.totalorder %s28, %s44
      %p46 = scmp.eq.s32.totalorder %s20, 0
      %p47 = por %p45, %p46
      %s49 = sadd.s32 %s48, 1
      %p52 = scmp.eq.s32.totalorder %s14, 1
      %p53 = scmp.ne.s32.totalorder %s48, %s50
      %p54 = scmp.eq.s32.totalorder %s14, 0
      %p55 = por %p53, %p54
      %p56 = scmp.ne.s32.totalorder %s48, %s50
      %p57 = scmp.eq.s32.totalorder %s19, 1
      %p58 = por %p56, %p57
      %p59 = scmp.ne.s32.totalorder %s50, %s51
      %p60 = scmp.eq.s32.totalorder %s19, 0
      %p61 = por %p59, %p60
      %p62 = scmp.ne.s32.totalorder %s50, %s51
      %p63 = scmp.eq.s32.totalorder %s20, 1
      %p64 = por %p62, %p63
      %p66 = scmp.ne.s32.totalorder %s51, %s65
      %p67 = scmp.eq.s32.totalorder %s20, 0
      %p68 = por %p66, %p67
      %s70 = sadd.s32 %s69, 1
      %p73 = scmp.eq.s32.totalorder %s14, 1
      %p74 = scmp.ne.s32.totalorder %s69, %s71
      %p75 = scmp.eq.s32.totalorder %s14, 0
      %p76 = por %p74, %p75
      %p77 = scmp.ne.s32.totalorder %s69, %s71
      %p78 = scmp.eq.s32.totalorder %s19, 1
      %p79 = por %p77, %p78
      %p80 = scmp.ne.s32.totalorder %s71, %s72
      %p81 = scmp.eq.s32.totalorder %s19, 0
      %p82 = por %p80, %p81
      %p83 = scmp.ne.s32.totalorder %s71, %s72
      %p84 = scmp.eq.s32.totalorder %s20, 1
      %p85 = por %p83, %p84
      %p87 = scmp.ne.s32.totalorder %s72, %s86
      %p88 = scmp.eq.s32.totalorder %s20, 0
      %p89 = por %p87, %p88
      %s91 = sadd.s32 %s90, 1
      %p94 = scmp.eq.s32.totalorder %s14, 1
      %p95 = scmp.ne.s32.totalorder %s90, %s92
      %p96 = scmp.eq.s32.totalorder %s14, 0
      %p97 = por %p95, %p96
      %p98 = scmp.ne.s32.totalorder %s90, %s92
      %p99 = scmp.eq.s32.totalorder %s19, 1
      %p100 = por %p98, %p99
      %p101 = scmp.ne.s32.totalorder %s92, %s93
      %p102 = scmp.eq.s32.totalorder %s19, 0
      %p103 = por %p101, %p102
      %p104 = scmp.ne.s32.totalorder %s92, %s93
      %p105 = scmp.eq.s32.totalorder %s20, 1
      %p106 = por %p104, %p105
      %p108 = scmp.ne.s32.totalorder %s93, %s107
      %p109 = scmp.eq.s32.totalorder %s20, 0
      %p110 = por %p108, %p109
      %s111 = ssub.s32 %s14, %s21
      %p112 = scmp.eq.s32.totalorder %s111, 0
      %s114 = sadd.s32 %s113, 1
      %s115 = scalar_select %p112, %s113, %s114
      %p118 = pneg %p112
      %p119 = scmp.eq.s32.totalorder %s14, 1
      %p120 = por %p118, %p119
      %p121 = scmp.ne.s32.totalorder %s113, %s116
      %p122 = scmp.eq.s32.totalorder %s14, 0
      %p123 = por %p121, %p122
      %p124 = scmp.ne.s32.totalorder %s113, %s116
      %p125 = scmp.eq.s32.totalorder %s19, 1
      %p126 = por %p124, %p125
      %p127 = scmp.ne.s32.totalorder %s116, %s117
      %p128 = scmp.eq.s32.totalorder %s19, 0
      %p129 = por %p127, %p128
      %p130 = scmp.ne.s32.totalorder %s116, %s117
      %p131 = scmp.eq.s32.totalorder %s20, 1
      %p132 = por %p130, %p131
      %p134 = scmp.ne.s32.totalorder %s117, %s133
      %p135 = scmp.eq.s32.totalorder %s20, 0
      %p136 = por %p134, %p135
      %p137 = scmp.le.s32.totalorder 1, %s14
      %p138 = scmp.lt.s32.totalorder %s14, 3
      %p139 = pnand %p137, %p138
      %p140 = pneg %p139
      // Predicated region
      $region9: #{tpu_custom_call.1} parent=5 // pred_check
        _
      $region10: #{tpu_custom_call.1} parent=5 // pred_check_branch
        %142 = sbr.rel (%p139) target = $region12
      $region11: #{tpu_custom_call.1} parent=5 // pred_region
        %s143 = ssub.s32 %s14, 1
        // Predicated region
        $region13: #{tpu_custom_call.1} parent=11 // pred_check
          %p144 = pneg %p61
        $region14: #{tpu_custom_call.1} parent=11 // pred_check_branch
          %146 = sbr.rel (%p144) target = $region16
        $region15: #{tpu_custom_call.1} parent=11 // pred_region
          _
        $region16: #{tpu_custom_call.1} parent=11 // pred_fallthru
          _
        // Predicated region
        $region17: #{tpu_custom_call.1} parent=11 // pred_check
          %p147 = pneg %p82
        $region18: #{tpu_custom_call.1} parent=11 // pred_check_branch
          %149 = sbr.rel (%p147) target = $region20
        $region19: #{tpu_custom_call.1} parent=11 // pred_region
          %s151 = ssub.s32 3072, 3072
          %152 = vsyncadd [#allocation3], %s151
          %s153 = sshll.u32 [#allocation2], 4
          %s154 = int_to_ptr.vmem [resolvable:$true] %s153
          %159 = dma.hbm_to_vmem [thread:$0]  %s2, 3072, %s154, [#allocation3], 128, 128, 8
        $region20: #{tpu_custom_call.1} parent=11 // pred_fallthru
          _
        // Predicated region
        $region21: #{tpu_custom_call.1} parent=11 // pred_check
          %p160 = pneg %p103
        $region22: #{tpu_custom_call.1} parent=11 // pred_check_branch
          %162 = sbr.rel (%p160) target = $region24
        $region23: #{tpu_custom_call.1} parent=11 // pred_region
          _
        $region24: #{tpu_custom_call.1} parent=11 // pred_fallthru
          _
      $region12: #{tpu_custom_call.1} parent=5 // pred_fallthru
        _
      %p163 = scmp.lt.s32.totalorder %s14, 2
      // Predicated region
      $region25: #{tpu_custom_call.1} parent=5 // pred_check
        %p164 = pneg %p163
      $region26: #{tpu_custom_call.1} parent=5 // pred_check_branch
        %166 = sbr.rel (%p164) target = $region28
      $region27: #{tpu_custom_call.1} parent=5 // pred_region
        // Predicated region
        $region29: #{tpu_custom_call.1} parent=27 // pred_check
          %p167 = pneg %p34
        $region30: #{tpu_custom_call.1} parent=27 // pred_check_branch
          %169 = sbr.rel (%p167) target = $region32
        $region31: #{tpu_custom_call.1} parent=27 // pred_region
          %p170 = scmp.lt.s32.totalorder %s14, 1
          %s171 = scalar_select %p170, %s14, 1
          %s172 = smul.addr %s171, 2
          %s173 = smul.addr %s172, 8
          %s174 = scalar_lea.vmem %s0, %s173
        $region32: #{tpu_custom_call.1} parent=27 // pred_fallthru
          _
      $region28: #{tpu_custom_call.1} parent=5 // pred_fallthru
        _
      %p175 = scmp.le.s32.totalorder 1, %s14
      %p176 = scmp.lt.s32.totalorder %s14, 3
      %p177 = pnand %p175, %p176
      %p178 = pneg %p177
      // Predicated region
      $region33: #{tpu_custom_call.1} parent=5 // pred_check
        _
      $region34: #{tpu_custom_call.1} parent=5 // pred_check_branch
        %180 = sbr.rel (%p177) target = $region36
      $region35: #{tpu_custom_call.1} parent=5 // pred_region
        %s181 = ssub.s32 %s14, 1
        // Predicated region
        $region37: #{tpu_custom_call.1} parent=35 // pred_check
          %p182 = pneg %p82
        $region38: #{tpu_custom_call.1} parent=35 // pred_check_branch
          %184 = sbr.rel (%p182) target = $region40
        $region39: #{tpu_custom_call.1} parent=35 // pred_region
          %185 = dma.done [#allocation3], 3072
        $region40: #{tpu_custom_call.1} parent=35 // pred_fallthru
          _
        %p186 = scmp.lt.s32.totalorder %s19, 1
        %s187 = scalar_select %p186, %s19, 1
        %s188 = smul.addr %s187, 2
        %s189 = smul.addr %s188, 8
        %s190 = scalar_lea.vmem %s0, %s189
        %p191 = pneg %p40
        %p192 = pneg %p37
        %p193 = pneg %p61
        %p194 = pneg %p58
        %p195 = pneg %p82
        %p196 = pneg %p79
        %p197 = pneg %p103
        %p198 = pneg %p100
        %p199 = pneg %p129
        %p200 = pneg %p126
        %s201 = sand.u32 %s116, 1
        %s202 = scalar_lea.sflag [#allocation4], %s201
        %s203 = sand.u32 %s116, 1
        %s204 = smul.addr %s203, 32
        %s205 = scalar_lea.vmem [#allocation5], %s204
        %p206 = scmp.lt.s32.totalorder %s19, 1
        %s207 = scalar_select %p206, %s19, 1
        %s208 = smul.addr %s207, 2
        %s209 = smul.addr %s208, 8
        %s210 = scalar_lea.vmem %s0, %s209
        %v211 = vld [vmem:[%s210] sm:$0xff]
        %v212 = vld [vmem:[%s210 + $0x8] sm:$0xff]
        %v213 = vld [vmem:[%s1] sm:$0xff]
        %v214 = vld [vmem:[%s1 + $0x8] sm:$0xff]
        %v215 = vld [vmem:[%s1 + $0x10] sm:$0xff]
        %v216 = vld [vmem:[%s1 + $0x18] sm:$0xff]
        %v217 = vld [vmem:[%s1 + $0x20] sm:$0xff]
        %v218 = vld [vmem:[%s1 + $0x28] sm:$0xff]
        %v219 = vld [vmem:[%s1 + $0x30] sm:$0xff]
        %v220 = vld [vmem:[%s1 + $0x38] sm:$0xff]
        %v221 = vld [vmem:[%s1 + $0x40] sm:$0xff]
        %v222 = vld [vmem:[%s1 + $0x48] sm:$0xff]
        %v223 = vld [vmem:[%s1 + $0x50] sm:$0xff]
        %v224 = vld [vmem:[%s1 + $0x58] sm:$0xff]
        %vm225 = vcmask 130048
        %v227 = vsel %vm225, %v213, 0
        %v230 = vsel %vm225, %v214, 0
        %v233 = vsel %vm225, %v215, 0
        %v236 = vsel %vm225, %v216, 0
        %v239 = vsel %vm225, %v217, 0
        %v242 = vsel %vm225, %v218, 0
        %v245 = vsel %vm225, %v219, 0
        %v248 = vsel %vm225, %v220, 0
        %v251 = vsel %vm225, %v221, 0
        %v254 = vsel %vm225, %v222, 0
        %v257 = vsel %vm225, %v223, 0
        %v260 = vsel %vm225, %v224, 0
        %262 = vmatprep.subr.mxu0 0.0
        %263 = vmatpush1.msra.mxu0 0.0
        %264 = vmatprep.subr.mxu0 0.0
        %265 = vmatpush1.msra.mxu0 0.0
        %266 = vmatprep.subr.mxu0 0.0
        %267 = vmatpush1.msra.mxu0 0.0
        %268 = vmatprep.subr.mxu0 0.0
        %269 = vmatpush1.msra.mxu0 0.0
        %270 = vmatprep.subr.mxu0 0.0
        %271 = vmatpush1.msra.mxu0 0.0
        %272 = vmatprep.subr.mxu0 0.0
        %273 = vmatpush1.msra.mxu0 0.0
        %274 = vmatprep.subr.mxu0 0.0
        %275 = vmatpush1.msra.mxu0 0.0
        %276 = vmatprep.subr.mxu0 0.0
        %277 = vmatpush1.msra.mxu0 0.0
        %278 = vmatprep.subr.mxu0 0.0
        %279 = vmatpush1.msra.mxu0 0.0
        %280 = vmatprep.subr.mxu0 0.0
        %281 = vmatpush1.msra.mxu0 0.0
        %282 = vmatprep.subr.mxu0 0.0
        %283 = vmatpush1.msra.mxu0 0.0
        %284 = vmatprep.subr.mxu0 0.0
        %285 = vmatpush1.msra.mxu0 0.0
        %286 = vmatprep.subr.mxu0 0.0
        %287 = vmatpush1.msra.mxu0 0.0
        %288 = vmatprep.subr.mxu0 0.0
        %289 = vmatpush1.msra.mxu0 0.0
        %290 = vmatprep.subr.mxu0 0.0
        %291 = vmatpush1.msra.mxu0 %v212
        %292 = vmatprep.subr.mxu0 0.0
        %293 = vmatpush1.msra.mxu0 %v211
        %294 = vmatprep.subr.mxu0 0.0
        %295 = vmatpush2.msra.mxu0 0.0
        %296 = vmatprep.subr.mxu0 0.0
        %297 = vmatpush2.msra.mxu0 0.0
        %298 = vmatprep.subr.mxu0 0.0
        %299 = vmatpush2.msra.mxu0 0.0
        %300 = vmatprep.subr.mxu0 0.0
        %301 = vmatpush2.msra.mxu0 0.0
        %302 = vmatprep.subr.mxu0 0.0
        %303 = vmatpush2.msra.mxu0 0.0
        %304 = vmatprep.subr.mxu0 0.0
        %305 = vmatpush2.msra.mxu0 0.0
        %306 = vmatprep.subr.mxu0 0.0
        %307 = vmatpush2.msra.mxu0 0.0
        %308 = vmatprep.subr.mxu0 0.0
        %309 = vmatpush2.msra.mxu0 0.0
        %310 = vmatprep.subr.mxu0 0.0
        %311 = vmatpush2.msra.mxu0 0.0
        %312 = vmatprep.subr.mxu0 0.0
        %313 = vmatpush2.msra.mxu0 0.0
        %314 = vmatprep.subr.mxu0 0.0
        %315 = vmatpush2.msra.mxu0 0.0
        %316 = vmatprep.subr.mxu0 0.0
        %317 = vmatpush2.msra.mxu0 0.0
        %318 = vmatprep.subr.mxu0 0.0
        %319 = vmatpush2.msra.mxu0 0.0
        %320 = vmatprep.subr.mxu0 0.0
        %321 = vmatpush2.msra.mxu0 0.0
        %322 = vmatprep.subr.mxu0 0.0
        %323 = vmatpush2.msra.mxu0 0.0
        %324 = vmatprep.subr.mxu0 0.0
        %325 = vmatpush2.msra.mxu0 0.0
        %326 = vmatprep.mubr.f32.mxu0 0.0
        %327 = vmatmul.mubr.f32.gmra.mxu0 %v227
        %v328 = vpop.f32.mrf.mxu0
        %v329 = vadd.f32 0.0, %v328
        %v330 = vpop.f32.mrf.mxu0
        %331 = vmatprep.mubr.f32.mxu0 0.0
        %332 = vmatmul.mubr.f32.gmra.mxu0 %v230
        %v333 = vpop.f32.mrf.mxu0
        %v334 = vadd.f32 0.0, %v333
        %v335 = vpop.f32.mrf.mxu0
        %336 = vmatprep.mubr.f32.mxu0 0.0
        %337 = vmatmul.mubr.f32.gmra.mxu0 %v233
        %v338 = vpop.f32.mrf.mxu0
        %v339 = vadd.f32 0.0, %v338
        %v340 = vpop.f32.mrf.mxu0
        %341 = vmatprep.mubr.f32.mxu0 0.0
        %342 = vmatmul.mubr.f32.gmra.mxu0 %v236
        %v343 = vpop.f32.mrf.mxu0
        %v344 = vadd.f32 0.0, %v343
        %v345 = vpop.f32.mrf.mxu0
        %346 = vmatprep.mubr.f32.mxu0 0.0
        %347 = vmatmul.mubr.f32.gmra.mxu0 %v239
        %v348 = vpop.f32.mrf.mxu0
        %v349 = vadd.f32 0.0, %v348
        %v350 = vpop.f32.mrf.mxu0
        %351 = vmatprep.mubr.f32.mxu0 0.0
        %352 = vmatmul.mubr.f32.gmra.mxu0 %v242
        %v353 = vpop.f32.mrf.mxu0
        %v354 = vadd.f32 0.0, %v353
        %v355 = vpop.f32.mrf.mxu0
        %356 = vmatprep.mubr.f32.mxu0 0.0
        %357 = vmatmul.mubr.f32.gmra.mxu0 %v245
        %v358 = vpop.f32.mrf.mxu0
        %v359 = vadd.f32 0.0, %v358
        %v360 = vpop.f32.mrf.mxu0
        %361 = vmatprep.mubr.f32.mxu0 0.0
        %362 = vmatmul.mubr.f32.gmra.mxu0 %v248
        %v363 = vpop.f32.mrf.mxu0
        %v364 = vadd.f32 0.0, %v363
        %v365 = vpop.f32.mrf.mxu0
        %366 = vmatprep.mubr.f32.mxu0 0.0
        %367 = vmatmul.mubr.f32.gmra.mxu0 %v251
        %v368 = vpop.f32.mrf.mxu0
        %v369 = vadd.f32 0.0, %v368
        %v370 = vpop.f32.mrf.mxu0
        %371 = vmatprep.mubr.f32.mxu0 0.0
        %372 = vmatmul.mubr.f32.gmra.mxu0 %v254
        %v373 = vpop.f32.mrf.mxu0
        %v374 = vadd.f32 0.0, %v373
        %v375 = vpop.f32.mrf.mxu0
        %376 = vmatprep.mubr.f32.mxu0 0.0
        %377 = vmatmul.mubr.f32.gmra.mxu0 %v257
        %v378 = vpop.f32.mrf.mxu0
        %v379 = vadd.f32 0.0, %v378
        %v380 = vpop.f32.mrf.mxu0
        %381 = vmatprep.mubr.f32.mxu0 0.0
        %382 = vmatmul.mubr.f32.gmra.mxu0 %v260
        %v383 = vpop.f32.mrf.mxu0
        %v384 = vadd.f32 0.0, %v383
        %v385 = vpop.f32.mrf.mxu0
        %386 = vdwg.mxu0
        %v387 = vld [vmem:[#allocation2] sm:$0xff]
        %v388 = vld [vmem:[#allocation2 + $0x8] sm:$0xff]
        %v389 = vld [vmem:[#allocation2 + $0x10] sm:$0xff]
        %v390 = vld [vmem:[#allocation2 + $0x18] sm:$0xff]
        %v391 = vld [vmem:[#allocation2 + $0x20] sm:$0xff]
        %v392 = vld [vmem:[#allocation2 + $0x28] sm:$0xff]
        %v393 = vld [vmem:[#allocation2 + $0x30] sm:$0xff]
        %v394 = vld [vmem:[#allocation2 + $0x38] sm:$0xff]
        %s395 = scalar_lea.vmem [#allocation2], 64
        %v396 = vld [vmem:[%s395] sm:$0xff]
        %v397 = vld [vmem:[%s395 + $0x8] sm:$0xff]
        %v398 = vld [vmem:[%s395 + $0x10] sm:$0xff]
        %v399 = vld [vmem:[%s395 + $0x18] sm:$0xff]
        %v400 = vld [vmem:[%s395 + $0x20] sm:$0xff]
        %v401 = vld [vmem:[%s395 + $0x28] sm:$0xff]
        %v402 = vld [vmem:[%s395 + $0x30] sm:$0xff]
        %v403 = vld [vmem:[%s395 + $0x38] sm:$0xff]
        %vm404 = vcmask 523264
        %v406 = vsel %vm404, %v349, 0
        %v409 = vsel %vm404, %v354, 0
        %v412 = vsel %vm404, %v359, 0
        %v415 = vsel %vm404, %v364, 0
        %417 = vmatprep.subr.mxu0 0.0
        %418 = vmatpush1.msra.mxu0 0.0
        %419 = vmatprep.subr.mxu0 0.0
        %420 = vmatpush1.msra.mxu0 0.0
        %421 = vmatprep.subr.mxu0 0.0
        %422 = vmatpush1.msra.mxu0 0.0
        %423 = vmatprep.subr.mxu0 0.0
        %424 = vmatpush1.msra.mxu0 0.0
        %425 = vmatprep.subr.mxu0 0.0
        %426 = vmatpush1.msra.mxu0 0.0
        %427 = vmatprep.subr.mxu0 0.0
        %428 = vmatpush1.msra.mxu0 0.0
        %429 = vmatprep.subr.mxu0 0.0
        %430 = vmatpush1.msra.mxu0 0.0
        %431 = vmatprep.subr.mxu0 0.0
        %432 = vmatpush1.msra.mxu0 0.0
        %433 = vmatprep.subr.mxu0 0.0
        %434 = vmatpush1.msra.mxu0 %v403
        %435 = vmatprep.subr.mxu0 0.0
        %436 = vmatpush1.msra.mxu0 %v402
        %437 = vmatprep.subr.mxu0 0.0
        %438 = vmatpush1.msra.mxu0 %v401
        %439 = vmatprep.subr.mxu0 0.0
        %440 = vmatpush1.msra.mxu0 %v400
        %441 = vmatprep.subr.mxu0 0.0
        %442 = vmatpush1.msra.mxu0 %v399
        %443 = vmatprep.subr.mxu0 0.0
        %444 = vmatpush1.msra.mxu0 %v398
        %445 = vmatprep.subr.mxu0 0.0
        %446 = vmatpush1.msra.mxu0 %v397
        %447 = vmatprep.subr.mxu0 0.0
        %448 = vmatpush1.msra.mxu0 %v396
        %449 = vmatprep.subr.mxu0 0.0
        %450 = vmatpush2.msra.mxu0 0.0
        %451 = vmatprep.subr.mxu0 0.0
        %452 = vmatpush2.msra.mxu0 0.0
        %453 = vmatprep.subr.mxu0 0.0
        %454 = vmatpush2.msra.mxu0 0.0
        %455 = vmatprep.subr.mxu0 0.0
        %456 = vmatpush2.msra.mxu0 0.0
        %457 = vmatprep.subr.mxu0 0.0
        %458 = vmatpush2.msra.mxu0 0.0
        %459 = vmatprep.subr.mxu0 0.0
        %460 = vmatpush2.msra.mxu0 0.0
        %461 = vmatprep.subr.mxu0 0.0
        %462 = vmatpush2.msra.mxu0 0.0
        %463 = vmatprep.subr.mxu0 0.0
        %464 = vmatpush2.msra.mxu0 0.0
        %465 = vmatprep.subr.mxu0 0.0
        %466 = vmatpush2.msra.mxu0 0.0
        %467 = vmatprep.subr.mxu0 0.0
        %468 = vmatpush2.msra.mxu0 0.0
        %469 = vmatprep.subr.mxu0 0.0
        %470 = vmatpush2.msra.mxu0 0.0
        %471 = vmatprep.subr.mxu0 0.0
        %472 = vmatpush2.msra.mxu0 0.0
        %473 = vmatprep.subr.mxu0 0.0
        %474 = vmatpush2.msra.mxu0 0.0
        %475 = vmatprep.subr.mxu0 0.0
        %476 = vmatpush2.msra.mxu0 0.0
        %477 = vmatprep.subr.mxu0 0.0
        %478 = vmatpush2.msra.mxu0 0.0
        %479 = vmatprep.subr.mxu0 0.0
        %480 = vmatpush2.msra.mxu0 0.0
        %481 = vmatprep.mubr.f32.mxu0 0.0
        %482 = vmatmul.mubr.f32.gmra.mxu0 %v406
        %v483 = vpop.f32.mrf.mxu0
        %v484 = vadd.f32 0.0, %v483
        %v485 = vpop.f32.mrf.mxu0
        %486 = vmatprep.mubr.f32.mxu0 0.0
        %487 = vmatmul.mubr.f32.gmra.mxu0 %v409
        %v488 = vpop.f32.mrf.mxu0
        %v489 = vadd.f32 0.0, %v488
        %v490 = vpop.f32.mrf.mxu0
        %491 = vmatprep.mubr.f32.mxu0 0.0
        %492 = vmatmul.mubr.f32.gmra.mxu0 %v412
        %v493 = vpop.f32.mrf.mxu0
        %v494 = vadd.f32 0.0, %v493
        %v495 = vpop.f32.mrf.mxu0
        %496 = vmatprep.mubr.f32.mxu0 0.0
        %497 = vmatmul.mubr.f32.gmra.mxu0 %v415
        %v498 = vpop.f32.mrf.mxu0
        %v499 = vadd.f32 0.0, %v498
        %v500 = vpop.f32.mrf.mxu0
        %501 = vdwg.mxu0
        %v503 = vsel %vm404, %v329, 0
        %v506 = vsel %vm404, %v334, 0
        %v509 = vsel %vm404, %v339, 0
        %v512 = vsel %vm404, %v344, 0
        %514 = vmatprep.subr.mxu0 0.0
        %515 = vmatpush1.msra.mxu0 0.0
        %516 = vmatprep.subr.mxu0 0.0
        %517 = vmatpush1.msra.mxu0 0.0
        %518 = vmatprep.subr.mxu0 0.0
        %519 = vmatpush1.msra.mxu0 0.0
        %520 = vmatprep.subr.mxu0 0.0
        %521 = vmatpush1.msra.mxu0 0.0
        %522 = vmatprep.subr.mxu0 0.0
        %523 = vmatpush1.msra.mxu0 0.0
        %524 = vmatprep.subr.mxu0 0.0
        %525 = vmatpush1.msra.mxu0 0.0
        %526 = vmatprep.subr.mxu0 0.0
        %527 = vmatpush1.msra.mxu0 0.0
        %528 = vmatprep.subr.mxu0 0.0
        %529 = vmatpush1.msra.mxu0 0.0
        %530 = vmatprep.subr.mxu0 0.0
        %531 = vmatpush1.msra.mxu0 %v394
        %532 = vmatprep.subr.mxu0 0.0
        %533 = vmatpush1.msra.mxu0 %v393
        %534 = vmatprep.subr.mxu0 0.0
        %535 = vmatpush1.msra.mxu0 %v392
        %536 = vmatprep.subr.mxu0 0.0
        %537 = vmatpush1.msra.mxu0 %v391
        %538 = vmatprep.subr.mxu0 0.0
        %539 = vmatpush1.msra.mxu0 %v390
        %540 = vmatprep.subr.mxu0 0.0
        %541 = vmatpush1.msra.mxu0 %v389
        %542 = vmatprep.subr.mxu0 0.0
        %543 = vmatpush1.msra.mxu0 %v388
        %544 = vmatprep.subr.mxu0 0.0
        %545 = vmatpush1.msra.mxu0 %v387
        %546 = vmatprep.subr.mxu0 0.0
        %547 = vmatpush2.msra.mxu0 0.0
        %548 = vmatprep.subr.mxu0 0.0
        %549 = vmatpush2.msra.mxu0 0.0
        %550 = vmatprep.subr.mxu0 0.0
        %551 = vmatpush2.msra.mxu0 0.0
        %552 = vmatprep.subr.mxu0 0.0
        %553 = vmatpush2.msra.mxu0 0.0
        %554 = vmatprep.subr.mxu0 0.0
        %555 = vmatpush2.msra.mxu0 0.0
        %556 = vmatprep.subr.mxu0 0.0
        %557 = vmatpush2.msra.mxu0 0.0
        %558 = vmatprep.subr.mxu0 0.0
        %559 = vmatpush2.msra.mxu0 0.0
        %560 = vmatprep.subr.mxu0 0.0
        %561 = vmatpush2.msra.mxu0 0.0
        %562 = vmatprep.subr.mxu0 0.0
        %563 = vmatpush2.msra.mxu0 0.0
        %564 = vmatprep.subr.mxu0 0.0
        %565 = vmatpush2.msra.mxu0 0.0
        %566 = vmatprep.subr.mxu0 0.0
        %567 = vmatpush2.msra.mxu0 0.0
        %568 = vmatprep.subr.mxu0 0.0
        %569 = vmatpush2.msra.mxu0 0.0
        %570 = vmatprep.subr.mxu0 0.0
        %571 = vmatpush2.msra.mxu0 0.0
        %572 = vmatprep.subr.mxu0 0.0
        %573 = vmatpush2.msra.mxu0 0.0
        %574 = vmatprep.subr.mxu0 0.0
        %575 = vmatpush2.msra.mxu0 0.0
        %576 = vmatprep.subr.mxu0 0.0
        %577 = vmatpush2.msra.mxu0 0.0
        %578 = vmatprep.mubr.f32.mxu0 0.0
        %579 = vmatmul.mubr.f32.gmra.mxu0 %v503
        %v580 = vpop.f32.mrf.mxu0
        %v581 = vadd.f32 %v484, %v580
        %v582 = vpop.f32.mrf.mxu0
        %583 = vmatprep.mubr.f32.mxu0 0.0
        %584 = vmatmul.mubr.f32.gmra.mxu0 %v506
        %v585 = vpop.f32.mrf.mxu0
        %v586 = vadd.f32 %v489, %v585
        %v587 = vpop.f32.mrf.mxu0
        %588 = vmatprep.mubr.f32.mxu0 0.0
        %589 = vmatmul.mubr.f32.gmra.mxu0 %v509
        %v590 = vpop.f32.mrf.mxu0
        %v591 = vadd.f32 %v494, %v590
        %v592 = vpop.f32.mrf.mxu0
        %593 = vmatprep.mubr.f32.mxu0 0.0
        %594 = vmatmul.mubr.f32.gmra.mxu0 %v512
        %v595 = vpop.f32.mrf.mxu0
        %v596 = vadd.f32 %v499, %v595
        %v597 = vpop.f32.mrf.mxu0
        %598 = vdwg.mxu0
        %s599 = scalar_lea.vmem [#allocation2], 128
        %v600 = vld [vmem:[%s599] sm:$0xff]
        %v601 = vld [vmem:[%s599 + $0x8] sm:$0xff]
        %v602 = vld [vmem:[%s599 + $0x10] sm:$0xff]
        %v603 = vld [vmem:[%s599 + $0x18] sm:$0xff]
        %v604 = vld [vmem:[%s599 + $0x20] sm:$0xff]
        %v605 = vld [vmem:[%s599 + $0x28] sm:$0xff]
        %v606 = vld [vmem:[%s599 + $0x30] sm:$0xff]
        %v607 = vld [vmem:[%s599 + $0x38] sm:$0xff]
        %v609 = vsel %vm404, %v369, 0
        %v612 = vsel %vm404, %v374, 0
        %v615 = vsel %vm404, %v379, 0
        %v618 = vsel %vm404, %v384, 0
        %620 = vmatprep.subr.mxu0 0.0
        %621 = vmatpush1.msra.mxu0 0.0
        %622 = vmatprep.subr.mxu0 0.0
        %623 = vmatpush1.msra.mxu0 0.0
        %624 = vmatprep.subr.mxu0 0.0
        %625 = vmatpush1.msra.mxu0 0.0
        %626 = vmatprep.subr.mxu0 0.0
        %627 = vmatpush1.msra.mxu0 0.0
        %628 = vmatprep.subr.mxu0 0.0
        %629 = vmatpush1.msra.mxu0 0.0
        %630 = vmatprep.subr.mxu0 0.0
        %631 = vmatpush1.msra.mxu0 0.0
        %632 = vmatprep.subr.mxu0 0.0
        %633 = vmatpush1.msra.mxu0 0.0
        %634 = vmatprep.subr.mxu0 0.0
        %635 = vmatpush1.msra.mxu0 0.0
        %636 = vmatprep.subr.mxu0 0.0
        %637 = vmatpush1.msra.mxu0 %v607
        %638 = vmatprep.subr.mxu0 0.0
        %639 = vmatpush1.msra.mxu0 %v606
        %640 = vmatprep.subr.mxu0 0.0
        %641 = vmatpush1.msra.mxu0 %v605
        %642 = vmatprep.subr.mxu0 0.0
        %643 = vmatpush1.msra.mxu0 %v604
        %644 = vmatprep.subr.mxu0 0.0
        %645 = vmatpush1.msra.mxu0 %v603
        %646 = vmatprep.subr.mxu0 0.0
        %647 = vmatpush1.msra.mxu0 %v602
        %648 = vmatprep.subr.mxu0 0.0
        %649 = vmatpush1.msra.mxu0 %v601
        %650 = vmatprep.subr.mxu0 0.0
        %651 = vmatpush1.msra.mxu0 %v600
        %652 = vmatprep.subr.mxu0 0.0
        %653 = vmatpush2.msra.mxu0 0.0
        %654 = vmatprep.subr.mxu0 0.0
        %655 = vmatpush2.msra.mxu0 0.0
        %656 = vmatprep.subr.mxu0 0.0
        %657 = vmatpush2.msra.mxu0 0.0
        %658 = vmatprep.subr.mxu0 0.0
        %659 = vmatpush2.msra.mxu0 0.0
        %660 = vmatprep.subr.mxu0 0.0
        %661 = vmatpush2.msra.mxu0 0.0
        %662 = vmatprep.subr.mxu0 0.0
        %663 = vmatpush2.msra.mxu0 0.0
        %664 = vmatprep.subr.mxu0 0.0
        %665 = vmatpush2.msra.mxu0 0.0
        %666 = vmatprep.subr.mxu0 0.0
        %667 = vmatpush2.msra.mxu0 0.0
        %668 = vmatprep.subr.mxu0 0.0
        %669 = vmatpush2.msra.mxu0 0.0
        %670 = vmatprep.subr.mxu0 0.0
        %671 = vmatpush2.msra.mxu0 0.0
        %672 = vmatprep.subr.mxu0 0.0
        %673 = vmatpush2.msra.mxu0 0.0
        %674 = vmatprep.subr.mxu0 0.0
        %675 = vmatpush2.msra.mxu0 0.0
        %676 = vmatprep.subr.mxu0 0.0
        %677 = vmatpush2.msra.mxu0 0.0
        %678 = vmatprep.subr.mxu0 0.0
        %679 = vmatpush2.msra.mxu0 0.0
        %680 = vmatprep.subr.mxu0 0.0
        %681 = vmatpush2.msra.mxu0 0.0
        %682 = vmatprep.subr.mxu0 0.0
        %683 = vmatpush2.msra.mxu0 0.0
        %684 = vmatprep.mubr.f32.mxu0 0.0
        %685 = vmatmul.mubr.f32.gmra.mxu0 %v609
        %v686 = vpop.f32.mrf.mxu0
        %v687 = vadd.f32 0.0, %v686
        %v688 = vpop.f32.mrf.mxu0
        %689 = vmatprep.mubr.f32.mxu0 0.0
        %690 = vmatmul.mubr.f32.gmra.mxu0 %v612
        %v691 = vpop.f32.mrf.mxu0
        %v692 = vadd.f32 0.0, %v691
        %v693 = vpop.f32.mrf.mxu0
        %694 = vmatprep.mubr.f32.mxu0 0.0
        %695 = vmatmul.mubr.f32.gmra.mxu0 %v615
        %v696 = vpop.f32.mrf.mxu0
        %v697 = vadd.f32 0.0, %v696
        %v698 = vpop.f32.mrf.mxu0
        %699 = vmatprep.mubr.f32.mxu0 0.0
        %700 = vmatmul.mubr.f32.gmra.mxu0 %v618
        %v701 = vpop.f32.mrf.mxu0
        %v702 = vadd.f32 0.0, %v701
        %v703 = vpop.f32.mrf.mxu0
        %704 = vdwg.mxu0
        %v705 = vadd.f32 %v581, %v687
        %v706 = vadd.f32 %v586, %v692
        %v707 = vadd.f32 %v591, %v697
        %v708 = vadd.f32 %v596, %v702
        %v709 = vld [vmem:[%s3] sm:$0x1]
        %v711 = vlaneseq
        %v712 = vshrl.u32 %v711, 7
        %v713 = vsub.s32 0, %v712
        %v714 = vrot.slane %v709, %v713
        %v716 = vadd.f32 %v705, %v714
        %v717 = vadd.f32 %v706, %v714
        %v718 = vadd.f32 %v707, %v714
        %v719 = vadd.f32 %v708, %v714
        %720 = vst [vmem:[%s205] sm:$0xff] %v716
        %721 = vst [vmem:[%s205 + $0x8] sm:$0xff] %v717
        %722 = vst [vmem:[%s205 + $0x10] sm:$0xff] %v718
        %723 = vst [vmem:[%s205 + $0x18] sm:$0xff] %v719
        %s724 = sand.u32 %s116, 1
        %s725 = scalar_lea.sflag [#allocation4], %s724
        %s726 = sand.u32 %s116, 1
        %s727 = smul.addr %s726, 32
        %s728 = scalar_lea.vmem [#allocation5], %s727
        // Predicated region
        $region41: #{tpu_custom_call.1} parent=35 // pred_check
          %p729 = pneg %p126
        $region42: #{tpu_custom_call.1} parent=35 // pred_check_branch
          %731 = sbr.rel (%p729) target = $region44
        $region43: #{tpu_custom_call.1} parent=35 // pred_region
          %s733 = ssub.s32 512, 512
          %734 = vsyncadd %s725, %s733
          %s735 = smul.addr %s19, 4
          %s736 = smul.addr %s735, 128
          %s737 = scalar_lea.hbm %s4, %s736
          %s738 = sshll.u32 %s728, 4
          %s739 = int_to_ptr.vmem [resolvable:$true] %s738
          %744 = dma.vmem_to_hbm [thread:$0]  %s739, 512, %s737, %s725, 128, 128, 8
        $region44: #{tpu_custom_call.1} parent=35 // pred_fallthru
          _
      $region36: #{tpu_custom_call.1} parent=5 // pred_fallthru
        _
      %p745 = scmp.le.s32.totalorder 2, %s14
      // Predicated region
      $region45: #{tpu_custom_call.1} parent=5 // pred_check
        %p746 = pneg %p745
      $region46: #{tpu_custom_call.1} parent=5 // pred_check_branch
        %748 = sbr.rel (%p746) target = $region48
      $region47: #{tpu_custom_call.1} parent=5 // pred_region
        %s749 = ssub.s32 %s14, 2
        // Predicated region
        $region49: #{tpu_custom_call.1} parent=47 // pred_check
          %p750 = pneg %p132
        $region50: #{tpu_custom_call.1} parent=47 // pred_check_branch
          %752 = sbr.rel (%p750) target = $region52
        $region51: #{tpu_custom_call.1} parent=47 // pred_region
          %s753 = sand.u32 %s117, 1
          %s754 = scalar_lea.sflag [#allocation4], %s753
          %s755 = sand.u32 %s117, 1
          %s756 = smul.addr %s755, 32
          %s757 = scalar_lea.vmem [#allocation5], %s756
          %758 = dma.done %s754, 512
        $region52: #{tpu_custom_call.1} parent=47 // pred_fallthru
          _
      $region48: #{tpu_custom_call.1} parent=5 // pred_fallthru
        _
    $region6: #{tpu_custom_call.1} parent=1 // loop_footer
      %s18 = sadd.s32 1, %s14
    $region7: #{tpu_custom_call.1} parent=1 // loop_footer_branch
      %13 = sbr.rel target = $region3
    $region8: #{tpu_custom_call.1} parent=1 // loop_exit
      _
    %759 = vsyncpa [#allocation3], 1
    %s760 = scalar_lea.sflag [#allocation3], 1
    %761 = vsyncpa %s760, 1
    %762 = vsyncpa [#allocation4], 1
    %s763 = scalar_lea.sflag [#allocation4], 1
    %764 = vsyncpa %s763, 1

</llo_original>
